<compile_context>
chip_gen: v7x
topology: tpu7x:2x2x1
jax: 0.10.0
libtpu: 0.0.40
codegen_flags: <defaults>
</compile_context>

<pallas_src>
import functools

import jax
import jax.numpy as jnp
from jax.experimental import pallas as pl
from jax.experimental.pallas import tpu as pltpu

_LANE = 128
_VMEM_LIMIT = 48 * 1024 * 1024      # scoped VMEM cap (fits v7x's 64 MiB VMEM)
_BUFFER_BYTES = 36 * 1024 * 1024    # target for double-buffered in+out+mask


def _mask_kernel(t_ref, m_ref, o_ref, *, value, inverse):
    m = m_ref[...]
    if m.dtype != jnp.bool_:          # accept integer masks without a pre-pass
        m = m != 0
    if inverse:
        m = jnp.logical_not(m)
    # NOTE: for integer tensors a fractional fill value truncates (as before).
    fill = jnp.asarray(value, dtype=t_ref.dtype)
    # jnp.where broadcasts a (..., 1, bl) mask tile over channel sublanes.
    o_ref[...] = jnp.where(m, fill, t_ref[...])


def _round_down(x, a):
    return (x // a) * a


def _choose_tiles_2d(M, L, budget_elems, row_align):
    """(bm, bl): bm multiple of row_align or == M, bl multiple of 128 or == L,
    bm*bl close to budget_elems, preferring the full lane extent."""
    if M * L <= budget_elems:
        return M, L
    if L * row_align <= budget_elems:
        bl = L
        bm = min(_round_down(budget_elems // L, row_align),
                 _round_down(M, row_align))
        return max(bm, row_align), bl
    bm = M if M < row_align else row_align
    bl = max(_LANE, _round_down(budget_elems // bm, _LANE))
    if bl >= L:
        bl = L
    return bm, bl


def _split_for_two_steps(bm, bl, M, L, row_align):
    """If the (M, L) tiling has a single block, shrink one dim (when legal) so
    the grid has >= 2 parallel steps (lets v7x's two TensorCores both work)."""
    if pl.cdiv(M, bm) * pl.cdiv(L, bl) >= 2:
        return bm, bl
    if M > row_align:
        return max(row_align, _round_down(pl.cdiv(M, 2), row_align)), bl
    if L > _LANE:
        return bm, max(_LANE, _round_down(pl.cdiv(L, 2), _LANE))
    return bm, bl


def mask_fill(tensor: jax.Array, mask: jax.Array, *, value: float = 0.0,
              inverse: bool = True) -> jax.Array:
    """Pallas equivalent of Mask.forward(tensor, mask) for NCHW inputs."""
    B, C_t, H, W = tensor.shape
    Bm, C_m, Hm, Wm = mask.shape
    assert (B, H, W) == (Bm, Hm, Wm), "batch/spatial dims must match"
    assert C_m == C_t or C_m == 1, (
        "supported cases: equal channel counts, or a single-channel mask "
        "broadcast over tensor channels")
    # TODO(synk): the m_c > t_c branch of the PyTorch module has no
    # well-defined semantics for general shapes and is not ported.

    L = H * W
    t_item = jnp.dtype(tensor.dtype).itemsize
    m_item = jnp.dtype(mask.dtype).itemsize
    row_align = max(8, 8 * (4 // t_item))          # 8 f32 / 16 bf16 / 32 int8
    # Elements per grid step so that double-buffered (in + out + mask) tiles
    # stay near _BUFFER_BYTES of VMEM on every generation.
    budget_elems = max(8 * _LANE,
                       (_BUFFER_BYTES // 2) // (2 * t_item + m_item))

    kernel = functools.partial(_mask_kernel, value=value, inverse=inverse)
    cost = pl.CostEstimate(
        flops=0, transcendentals=0,
        bytes_accessed=int(2 * tensor.size * t_item + mask.size * m_item))
    cparams = lambda nd: pltpu.CompilerParams(
        dimension_semantics=("parallel",) * nd,
        vmem_limit_bytes=_VMEM_LIMIT)

    if C_m == C_t:
        # Equal channels: collapse to a lane-dense 2D problem.
        N = tensor.size
        M = B * C_t
        if L % _LANE == 0:
            rows, cols, pad = M, L, 0
        else:
            # Look for a 128-multiple lane width that divides the flat size
            # (a free reshape); otherwise pad the flat tail once.
            cols = 0
            for cand in range(min(_round_down(N, _LANE), 64 * _LANE), 0, -_LANE):
                if N % cand == 0:
                    cols = cand
                    break
            if cols:
                rows, pad = N // cols, 0
            else:
                cols = min(8 * _LANE, pl.cdiv(N, _LANE) * _LANE)
                rows = pl.cdiv(N, cols)
                pad = rows * cols - N
        t2 = tensor.reshape(-1)
        m2 = mask.reshape(-1)
        if pad:
            t2 = jnp.pad(t2, (0, pad))
            m2 = jnp.pad(m2, (0, pad))
        t2 = t2.reshape(rows, cols)
        m2 = m2.reshape(rows, cols)

        bm, bl = _choose_tiles_2d(rows, cols, budget_elems, row_align)
        bm, bl = _split_for_two_steps(bm, bl, rows, cols, row_align)
        grid = (pl.cdiv(rows, bm), pl.cdiv(cols, bl))
        spec = pl.BlockSpec((bm, bl), lambda i, j: (i, j))
        out = pl.pallas_call(
            kernel,
            out_shape=jax.ShapeDtypeStruct((rows, cols), tensor.dtype),
            grid_spec=pltpu.PrefetchScalarGridSpec(
                num_scalar_prefetch=0,
                grid=grid,
                in_specs=[spec, spec],
                out_specs=spec),
            input_output_aliases={0: 0},
            compiler_params=cparams(2),
            cost_estimate=cost,
        )(t2, m2)
        if pad:
            return out.reshape(-1)[:N].reshape(tensor.shape)
        return out.reshape(tensor.shape)

    # C_m == 1: broadcast the single mask channel over every tensor channel.
    # Channel blocks get their own grid axis so the lane tile stays wide; the
    # tiny mask tile re-read per channel block is negligible traffic.
    t3 = tensor.reshape(B, C_t, L)
    m3 = mask.reshape(B, 1, L)
    c_blk, bl = _choose_tiles_2d(C_t, L, budget_elems, row_align)
    if B * pl.cdiv(C_t, c_blk) * pl.cdiv(L, bl) < 2:
        c_blk, bl = _split_for_two_steps(c_blk, bl, C_t, L, row_align)
    grid = (B, pl.cdiv(C_t, c_blk), pl.cdiv(L, bl))
    t_spec = pl.BlockSpec((1, c_blk, bl), lambda b, c, j: (b, c, j))
    m_spec = pl.BlockSpec((1, 1, bl), lambda b, c, j: (b, 0, j))
    out = pl.pallas_call(
        kernel,
        out_shape=jax.ShapeDtypeStruct((B, C_t, L), tensor.dtype),
        grid_spec=pltpu.PrefetchScalarGridSpec(
            num_scalar_prefetch=0,
            grid=grid,
            in_specs=[t_spec, m_spec],
            out_specs=t_spec),
        input_output_aliases={0: 0},
        compiler_params=cparams(3),
        cost_estimate=cost,
    )(t3, m3)
    return out.reshape(tensor.shape)


def _reference(tensor, mask, *, value=0.0, inverse=True):
    m = jnp.logical_not(mask) if inverse else mask
    if mask.shape[1] == 1 and tensor.shape[1] > 1:
        m = jnp.broadcast_to(m, tensor.shape)
    return jnp.where(m, jnp.asarray(value, tensor.dtype), tensor)


if __name__ == "__main__":
    key = jax.random.PRNGKey(0)
    k_t, k_m, k_m1, k_t2, k_m2 = jax.random.split(key, 5)

    B, C, H, W = 2, 4, 16, 16
    tensor = jax.random.normal(k_t, (B, C, H, W), dtype=jnp.float32)

    # Case 1: mask channels == tensor channels.
    mask_full = jax.random.bernoulli(k_m, 0.5, (B, C, H, W))
    out_full = jax.block_until_ready(mask_fill(tensor, mask_full))
    assert jnp.allclose(out_full, _reference(tensor, mask_full)), \
        "mismatch (equal-channel case)"

    # Case 2: single-channel mask broadcast over tensor channels.
    mask_one = jax.random.bernoulli(k_m1, 0.5, (B, 1, H, W))
    out_bcast = jax.block_until_ready(mask_fill(tensor, mask_one))
    assert jnp.allclose(out_bcast, _reference(tensor, mask_one)), \
        "mismatch (broadcast case)"

    # Case 3: spatial size not a multiple of 128 (exercises the lane-dense
    # repack / padded-tail path), non-zero fill, inverse=False.
    t_odd = jax.random.normal(k_t2, (2, 3, 7, 7), dtype=jnp.float32)
    m_odd = jax.random.bernoulli(k_m2, 0.3, (2, 3, 7, 7))
    out_odd = jax.block_until_ready(
        mask_fill(t_odd, m_odd, value=1.5, inverse=False))
    assert jnp.allclose(out_odd,
                        _reference(t_odd, m_odd, value=1.5, inverse=False)), \
        "mismatch (odd-spatial case)"

    print("KERNEL_OK")
</pallas_src>

<mosaic_0001>
module attributes {stable_mosaic.version = 11 : i64} {
  func.func @_mask_kernel(%arg0: i32, %arg1: i32, %arg2: memref<8x128xf32, #tpu.memory_space<vmem>>, %arg3: memref<8x128xi32, #tpu.memory_space<vmem>>, %arg4: memref<8x128xf32, #tpu.memory_space<vmem>>) attributes {dimension_semantics = [#tpu.dimension_semantics<parallel>, #tpu.dimension_semantics<parallel>], iteration_bounds = array<i64: 1, 2>, scalar_prefetch = 0 : i64, scratch_operands = 0 : i64, tpu.core_type = #tpu.core_type<tc>, window_params = [{transform_indices = @transform_0, window_bounds = array<i64: 8, 128>}, {transform_indices = @transform_1, window_bounds = array<i64: 8, 128>}, {transform_indices = @transform_2, window_bounds = array<i64: 8, 128>}]} {
    %c0 = arith.constant 0 : index
    %c0_0 = arith.constant 0 : index
    %0 = vector.load %arg3[%c0, %c0_0] : memref<8x128xi32, #tpu.memory_space<vmem>>, vector<8x128xi32>
    %cst = arith.constant dense<0> : vector<8x128xi32>
    %1 = arith.cmpi ne, %0, %cst : vector<8x128xi32>
    %cst_1 = arith.constant dense<true> : vector<8x128xi1>
    %2 = arith.xori %1, %cst_1 : vector<8x128xi1>
    %c0_2 = arith.constant 0 : index
    %c0_3 = arith.constant 0 : index
    %3 = vector.load %arg2[%c0_2, %c0_3] : memref<8x128xf32, #tpu.memory_space<vmem>>, vector<8x128xf32>
    %cst_4 = arith.constant 0.000000e+00 : f32
    %4 = vector.broadcast %cst_4 : f32 to vector<8x128xf32>
    %5 = arith.select %2, %4, %3 : vector<8x128xi1>, vector<8x128xf32>
    %c0_5 = arith.constant 0 : index
    %c0_6 = arith.constant 0 : index
    %6 = vector.load %arg4[%c0_5, %c0_6] : memref<8x128xf32, #tpu.memory_space<vmem>>, vector<8x128xf32>
    tpu.vector_store %arg4[%c0_5, %c0_6], %5 {strides = array<i32>} : memref<8x128xf32, #tpu.memory_space<vmem>>, vector<8x128xf32>,
    return
  }
  func.func @transform_0(%arg0: i32, %arg1: i32) -> (i32, i32) {
    %c0_i32 = arith.constant 0 : i32
    return %arg0, %arg1 : i32, i32
  }
  func.func @transform_1(%arg0: i32, %arg1: i32) -> (i32, i32) {
    %c0_i32 = arith.constant 0 : i32
    return %arg0, %arg1 : i32, i32
  }
  func.func @transform_2(%arg0: i32, %arg1: i32) -> (i32, i32) {
    %c0_i32 = arith.constant 0 : i32
    return %arg0, %arg1 : i32, i32
  }
}

</mosaic_0001>

<llo_original>
// kernel: tpu_custom_call.1
$region0: #{tpu_custom_call.1}
  #allocation0 [shape = 'u32[]', space=smem, size = 0x4, offset = 0x4, fixed_abs, tag = 'smem constant byte address 0x4 - core index']
  #allocation1 [shape = 'u32[144,128]{1,0:T(1,128)}', space=vmem, size = 0x12000, scoped, tag = 'internal scratch']
  %s0 = inlined_call_operand.hbm [shape: f32[8,256], index: 0, kind: input, shape index: {}, may-alias: {0,2}]
  %s1 = inlined_call_operand.vmem [shape: s32[8,256], index: 1, kind: input, shape index: {}]
  %s2 = inlined_call_operand.hbm [shape: f32[8,256], index: 2, kind: output, shape index: {}, may-alias: {0,2}]
  %s3 = sld [smem:[#allocation0]]
  $region45: #{tpu_custom_call.1} parent=0
    _
  %s5 = ssub.s32 1, %s3
  %s6 = scalar_select 0, %s5, %s3
  $region1: #{tpu_custom_call.1} parent=0
    #allocation2 [shape = 'u8[8192]{0}', space=vmem, size = 0x2000, scoped, tag = 'input window, operand 0']
    #allocation3 [shape = 's32[2]{0}', space=sflag, size = 0x8, scoped, tag = 'scoped memory for tpu_custom_call.1']
    #allocation4 [shape = 's32[2]{0}', space=sflag, size = 0x8, scoped, tag = 'scoped memory for tpu_custom_call.1']
    #allocation5 [shape = 'u8[8192]{0}', space=vmem, size = 0x2000, scoped, tag = 'output window, operand 0']
    %7 = vsyncpa [#allocation3], 0
    %s8 = scalar_lea.sflag [#allocation3], 1
    %9 = vsyncpa %s8, 0
    %10 = vsyncpa [#allocation4], 0
    %s11 = scalar_lea.sflag [#allocation4], 1
    %12 = vsyncpa %s11, 0
    loop: start=0, step=1, limit=4
    $region2: #{tpu_custom_call.1} parent=1 // loop_pre_header
      _
    $region3: #{tpu_custom_call.1} parent=1 // loop_header
      %s14 = sphi 0, %s18
      %p15 = scmp.ge.s32.totalorder %s14, 4
      %s21 = sphi 0, %s33
      %s22 = sphi 0, %s29
      %s23 = sphi 0, %s21
      %s24 = sphi 0, %s22
      %s25 = sphi 0, %s23
      %s26 = sphi 0, %s24
      %s38 = sphi 0, %s40
      %s41 = sphi 0, %s38
      %s42 = sphi 0, %s41
      %s58 = sphi 0, %s42
      %s66 = sphi 0, %s68
      %s69 = sphi 0, %s66
      %s70 = sphi 0, %s69
      %s86 = sphi 0, %s70
      %s94 = sphi 0, %s96
      %s97 = sphi 0, %s94
      %s98 = sphi 0, %s97
      %s114 = sphi 0, %s98
    $region4: #{tpu_custom_call.1} parent=1 // loop_header_branch
      %17 = sbr.rel (%p15) target = $region8
    $region5: #{tpu_custom_call.1} parent=1 // loop_body
      %s19 = ssub.s32 %s14, 1
      %s20 = ssub.s32 %s14, 2
      %s27 = sadd.s32 1, %s22
      %p28 = scmp.ge.s32.totalorder %s27, 2
      %s29 = scalar_select %p28, 0, %s27
      %s30 = sadd.s32 1, %s21
      %s31 = scalar_select %p28, %s30, %s21
      %p32 = scmp.ge.s32.totalorder %s31, 1
      %s33 = scalar_select %p32, 0, %s31
      %s34 = ssub.s32 %s21, %s33
      %s35 = ssub.s32 %s22, %s29
      %s36 = sor.u32 %s34, %s35
      %p37 = scmp.eq.s32.totalorder %s36, 0
      %s39 = sadd.s32 %s38, 1
      %s40 = scalar_select %p37, %s38, %s39
      %p43 = pneg %p37
      %p44 = scmp.eq.s32.totalorder %s14, 1
      %p45 = por %p43, %p44
      %p46 = scmp.ne.s32.totalorder %s38, %s41
      %p47 = scmp.eq.s32.totalorder %s14, 0
      %p48 = por %p46, %p47
      %p49 = scmp.ne.s32.totalorder %s38, %s41
      %p50 = scmp.eq.s32.totalorder %s19, 1
      %p51 = por %p49, %p50
      %p52 = scmp.ne.s32.totalorder %s41, %s42
      %p53 = scmp.eq.s32.totalorder %s19, 0
      %p54 = por %p52, %p53
      %p55 = scmp.ne.s32.totalorder %s41, %s42
      %p56 = scmp.eq.s32.totalorder %s20, 1
      %p57 = por %p55, %p56
      %p59 = scmp.ne.s32.totalorder %s42, %s58
      %p60 = scmp.eq.s32.totalorder %s20, 0
      %p61 = por %p59, %p60
      %s62 = ssub.s32 %s21, %s33
      %s63 = ssub.s32 %s22, %s29
      %s64 = sor.u32 %s62, %s63
      %p65 = scmp.eq.s32.totalorder %s64, 0
      %s67 = sadd.s32 %s66, 1
      %s68 = scalar_select %p65, %s66, %s67
      %p71 = pneg %p65
      %p72 = scmp.eq.s32.totalorder %s14, 1
      %p73 = por %p71, %p72
      %p74 = scmp.ne.s32.totalorder %s66, %s69
      %p75 = scmp.eq.s32.totalorder %s14, 0
      %p76 = por %p74, %p75
      %p77 = scmp.ne.s32.totalorder %s66, %s69
      %p78 = scmp.eq.s32.totalorder %s19, 1
      %p79 = por %p77, %p78
      %p80 = scmp.ne.s32.totalorder %s69, %s70
      %p81 = scmp.eq.s32.totalorder %s19, 0
      %p82 = por %p80, %p81
      %p83 = scmp.ne.s32.totalorder %s69, %s70
      %p84 = scmp.eq.s32.totalorder %s20, 1
      %p85 = por %p83, %p84
      %p87 = scmp.ne.s32.totalorder %s70, %s86
      %p88 = scmp.eq.s32.totalorder %s20, 0
      %p89 = por %p87, %p88
      %s90 = ssub.s32 %s21, %s33
      %s91 = ssub.s32 %s22, %s29
      %s92 = sor.u32 %s90, %s91
      %p93 = scmp.eq.s32.totalorder %s92, 0
      %s95 = sadd.s32 %s94, 1
      %s96 = scalar_select %p93, %s94, %s95
      %p99 = pneg %p93
      %p100 = scmp.eq.s32.totalorder %s14, 1
      %p101 = por %p99, %p100
      %p102 = scmp.ne.s32.totalorder %s94, %s97
      %p103 = scmp.eq.s32.totalorder %s14, 0
      %p104 = por %p102, %p103
      %p105 = scmp.ne.s32.totalorder %s94, %s97
      %p106 = scmp.eq.s32.totalorder %s19, 1
      %p107 = por %p105, %p106
      %p108 = scmp.ne.s32.totalorder %s97, %s98
      %p109 = scmp.eq.s32.totalorder %s19, 0
      %p110 = por %p108, %p109
      %p111 = scmp.ne.s32.totalorder %s97, %s98
      %p112 = scmp.eq.s32.totalorder %s20, 1
      %p113 = por %p111, %p112
      %p115 = scmp.ne.s32.totalorder %s98, %s114
      %p116 = scmp.eq.s32.totalorder %s20, 0
      %p117 = por %p115, %p116
      %p118 = scmp.le.s32.totalorder 1, %s14
      %p119 = scmp.lt.s32.totalorder %s14, 3
      %p120 = pnand %p118, %p119
      %p121 = pneg %p120
      // Predicated region
      $region9: #{tpu_custom_call.1} parent=5 // pred_check
        _
      $region10: #{tpu_custom_call.1} parent=5 // pred_check_branch
        %123 = sbr.rel (%p120) target = $region12
      $region11: #{tpu_custom_call.1} parent=5 // pred_region
        %s124 = ssub.s32 %s14, 1
      $region12: #{tpu_custom_call.1} parent=5 // pred_fallthru
        _
      %p125 = scmp.lt.s32.totalorder %s14, 2
      // Predicated region
      $region13: #{tpu_custom_call.1} parent=5 // pred_check
        %p126 = pneg %p125
      $region14: #{tpu_custom_call.1} parent=5 // pred_check_branch
        %128 = sbr.rel (%p126) target = $region16
      $region15: #{tpu_custom_call.1} parent=5 // pred_region
        // Predicated region
        $region17: #{tpu_custom_call.1} parent=15 // pred_check
          %p129 = pneg %p48
        $region18: #{tpu_custom_call.1} parent=15 // pred_check_branch
          %131 = sbr.rel (%p129) target = $region20
        $region19: #{tpu_custom_call.1} parent=15 // pred_region
          %s132 = sand.u32 %s38, 1
          %s133 = scalar_lea.sflag [#allocation3], %s132
          %s134 = sand.u32 %s38, 1
          %s135 = smul.addr %s134, 8
          %s136 = scalar_lea.vmem [#allocation2], %s135
          %s138 = ssub.s32 128, 128
          %139 = vsyncadd %s133, %s138
          %s140 = smul.addr %s21, 2
          %s141 = sadd.s32 %s22, %s140
          %s142 = smul.addr %s141, 128
          %s143 = scalar_lea.hbm %s0, %s142
          %s145 = sshll.u32 %s136, 4
          %s146 = int_to_ptr.vmem [resolvable:$true] %s145
          %148 = dma.hbm_to_vmem [thread:$0]  %s143, 128, %s146, %s133
        $region20: #{tpu_custom_call.1} parent=15 // pred_fallthru
          _
        // Predicated region
        $region21: #{tpu_custom_call.1} parent=15 // pred_check
          %p149 = pneg %p76
        $region22: #{tpu_custom_call.1} parent=15 // pred_check_branch
          %151 = sbr.rel (%p149) target = $region24
        $region23: #{tpu_custom_call.1} parent=15 // pred_region
          %p152 = scmp.lt.s32.totalorder %s21, 0
          %s153 = scalar_select %p152, %s21, 0
          %p154 = scmp.lt.s32.totalorder %s22, 1
          %s155 = scalar_select %p154, %s22, 1
          %s156 = smul.addr %s153, 2
          %s157 = sadd.s32 %s155, %s156
          %s158 = smul.addr %s157, 8
          %s159 = scalar_lea.vmem %s1, %s158
        $region24: #{tpu_custom_call.1} parent=15 // pred_fallthru
          _
      $region16: #{tpu_custom_call.1} parent=5 // pred_fallthru
        _
      %p160 = scmp.le.s32.totalorder 1, %s14
      %p161 = scmp.lt.s32.totalorder %s14, 3
      %p162 = pnand %p160, %p161
      %p163 = pneg %p162
      // Predicated region
      $region25: #{tpu_custom_call.1} parent=5 // pred_check
        _
      $region26: #{tpu_custom_call.1} parent=5 // pred_check_branch
        %165 = sbr.rel (%p162) target = $region28
      $region27: #{tpu_custom_call.1} parent=5 // pred_region
        %s166 = ssub.s32 %s14, 1
        %s167 = sand.u32 %s41, 1
        %s168 = scalar_lea.sflag [#allocation3], %s167
        %s169 = sand.u32 %s41, 1
        %s170 = smul.addr %s169, 8
        %s171 = scalar_lea.vmem [#allocation2], %s170
        // Predicated region
        $region29: #{tpu_custom_call.1} parent=27 // pred_check
          %p172 = pneg %p54
        $region30: #{tpu_custom_call.1} parent=27 // pred_check_branch
          %174 = sbr.rel (%p172) target = $region32
        $region31: #{tpu_custom_call.1} parent=27 // pred_region
          %175 = dma.done %s168, 128
        $region32: #{tpu_custom_call.1} parent=27 // pred_fallthru
          _
        %s176 = sand.u32 %s41, 1
        %s177 = scalar_lea.sflag [#allocation3], %s176
        %s178 = sand.u32 %s41, 1
        %s179 = smul.addr %s178, 8
        %s180 = scalar_lea.vmem [#allocation2], %s179
        %p181 = pneg %p54
        %p182 = pneg %p51
        %p183 = scmp.lt.s32.totalorder %s23, 0
        %s184 = scalar_select %p183, %s23, 0
        %p185 = scmp.lt.s32.totalorder %s24, 1
        %s186 = scalar_select %p185, %s24, 1
        %s187 = smul.addr %s184, 2
        %s188 = sadd.s32 %s186, %s187
        %s189 = smul.addr %s188, 8
        %s190 = scalar_lea.vmem %s1, %s189
        %p191 = pneg %p82
        %p192 = pneg %p79
        %p193 = pneg %p110
        %p194 = pneg %p107
        %s195 = sand.u32 %s97, 1
        %s196 = scalar_lea.sflag [#allocation4], %s195
        %s197 = sand.u32 %s97, 1
        %s198 = smul.addr %s197, 8
        %s199 = scalar_lea.vmem [#allocation5], %s198
        %p200 = scmp.lt.s32.totalorder %s23, 0
        %s201 = scalar_select %p200, %s23, 0
        %p202 = scmp.lt.s32.totalorder %s24, 1
        %s203 = scalar_select %p202, %s24, 1
        %s204 = smul.addr %s201, 2
        %s205 = sadd.s32 %s203, %s204
        %s206 = smul.addr %s205, 8
        %s207 = scalar_lea.vmem %s1, %s206
        %v208 = vld [vmem:[%s207] sm:$0xff]
        %vm209 = vcmp.ne.s32.totalorder %v208, 0
        %vm210 = vmxor %vm209, 1
        %v211 = vld [vmem:[%s171] sm:$0xff]
        %v212 = vsel %vm210, 0.0, %v211
        %213 = vst [vmem:[%s199] sm:$0xff] %v212
        %s214 = sand.u32 %s97, 1
        %s215 = scalar_lea.sflag [#allocation4], %s214
        %s216 = sand.u32 %s97, 1
        %s217 = smul.addr %s216, 8
        %s218 = scalar_lea.vmem [#allocation5], %s217
        // Predicated region
        $region33: #{tpu_custom_call.1} parent=27 // pred_check
          %p219 = pneg %p107
        $region34: #{tpu_custom_call.1} parent=27 // pred_check_branch
          %221 = sbr.rel (%p219) target = $region36
        $region35: #{tpu_custom_call.1} parent=27 // pred_region
          %s223 = ssub.s32 128, 128
          %224 = vsyncadd %s215, %s223
          %s225 = smul.addr %s23, 2
          %s226 = sadd.s32 %s24, %s225
          %s227 = smul.addr %s226, 128
          %s228 = scalar_lea.hbm %s2, %s227
          %s230 = sshll.u32 %s218, 4
          %s231 = int_to_ptr.vmem [resolvable:$true] %s230
          %233 = dma.vmem_to_hbm [thread:$0]  %s231, 128, %s228, %s215
        $region36: #{tpu_custom_call.1} parent=27 // pred_fallthru
          _
      $region28: #{tpu_custom_call.1} parent=5 // pred_fallthru
        _
      %p234 = scmp.le.s32.totalorder 2, %s14
      // Predicated region
      $region37: #{tpu_custom_call.1} parent=5 // pred_check
        %p235 = pneg %p234
      $region38: #{tpu_custom_call.1} parent=5 // pred_check_branch
        %237 = sbr.rel (%p235) target = $region40
      $region39: #{tpu_custom_call.1} parent=5 // pred_region
        %s238 = ssub.s32 %s14, 2
        // Predicated region
        $region41: #{tpu_custom_call.1} parent=39 // pred_check
          %p239 = pneg %p113
        $region42: #{tpu_custom_call.1} parent=39 // pred_check_branch
          %241 = sbr.rel (%p239) target = $region44
        $region43: #{tpu_custom_call.1} parent=39 // pred_region
          %s242 = sand.u32 %s98, 1
          %s243 = scalar_lea.sflag [#allocation4], %s242
          %s244 = sand.u32 %s98, 1
          %s245 = smul.addr %s244, 8
          %s246 = scalar_lea.vmem [#allocation5], %s245
          %247 = dma.done %s243, 128
        $region44: #{tpu_custom_call.1} parent=39 // pred_fallthru
          _
      $region40: #{tpu_custom_call.1} parent=5 // pred_fallthru
        _
    $region6: #{tpu_custom_call.1} parent=1 // loop_footer
      %s18 = sadd.s32 1, %s14
    $region7: #{tpu_custom_call.1} parent=1 // loop_footer_branch
      %13 = sbr.rel target = $region3
    $region8: #{tpu_custom_call.1} parent=1 // loop_exit
      _
    %248 = vsyncpa [#allocation3], 1
    %s249 = scalar_lea.sflag [#allocation3], 1
    %250 = vsyncpa %s249, 1
    %251 = vsyncpa [#allocation4], 1
    %s252 = scalar_lea.sflag [#allocation4], 1
    %253 = vsyncpa %s252, 1

</llo_original>
